<compile_context>
chip_gen: v5e
topology: v5e:2x2
jax: 0.10.0
libtpu: 0.0.40
codegen_flags: <defaults>
</compile_context>

<pallas_src>
import math
from functools import partial
from itertools import permutations

import numpy as np
import jax
import jax.numpy as jnp
from jax.experimental import pallas as pl
from jax.experimental.pallas import tpu as pltpu


def _round_up(x, m):
    return ((x + m - 1) // m) * m


# --------------------------------------------------------------------------
# Pallas kernels
# --------------------------------------------------------------------------

def _dist_min_kernel(x_ref, w_ref, o_ref):
    """Grid = (Cin, M_tiles).

    For one input channel c and one tile of M subgraph columns:
        dist[p, o, m] = || W[c,p,o,:] - X[c,:,m] ||^2
                      = ||X||^2  +  ( -2*W . X  +  ||W||^2 )
    The parenthesised part comes straight out of the matmul because Wpacked
    holds [-2*W | ||W||^2] and X has an appended ones-row.  The min over the
    P permutations is kept in-register (no scratch, no reduction grid axis),
    and ||X||^2 is computed once per tile (perm-invariant).
    """
    x = x_ref[0]                      # (D2, TM)   M on lanes
    w = w_ref[0]                      # (P, Cout, D2)
    n_perm = w.shape[0]

    ymin = jnp.dot(w[0], x, preferred_element_type=jnp.float32)        # (Cout, TM)
    for p in range(1, n_perm):
        ymin = jnp.minimum(
            ymin, jnp.dot(w[p], x, preferred_element_type=jnp.float32))

    # ||X||^2 per subgraph column; the appended ones-row contributes exactly 1.
    sx = jnp.sum(x * x, axis=0, keepdims=True) - 1.0                   # (1, TM)
    o_ref[0] = ymin + sx                                               # (Cout, TM)


def _one_minus_softmax_kernel(x_ref, o_ref):
    """x block: (1, Cout*Cin, N) with N (subgraphs) on lanes.
    out = (1 - softmax(x, axis=-1)) / N."""
    x = x_ref[0]                                     # (R, N)
    m = jnp.max(x, axis=-1, keepdims=True)
    e = jnp.exp(x - m)
    s = jnp.sum(e, axis=-1, keepdims=True)
    o_ref[0] = (1.0 - e / s) * (1.0 / x.shape[-1])


def _mean_kernel(f_ref, o_ref, *, inv_n):
    """f block: (B, F, TN) with N tiled on lanes; accumulate sum over N tiles
    into the (B, F) output and scale by 1/N on the last tile."""
    nt = pl.program_id(0)

    @pl.when(nt == 0)
    def _():
        o_ref[...] = jnp.zeros_like(o_ref)

    o_ref[...] += jnp.sum(f_ref[...], axis=-1)       # (B, F)

    @pl.when(nt == pl.num_programs(0) - 1)
    def _():
        o_ref[...] = o_ref[...] * inv_n


# --------------------------------------------------------------------------
# pallas_call wrappers
# --------------------------------------------------------------------------

def dist_min_pallas(X, Wpacked, tm):
    """X: (Cin, D2, M_pad) f32;  Wpacked: (Cin, P, Cout, D2) f32
       -> (Cin, Cout, M_pad) f32 (min over permutations of squared distance)."""
    Cin, D2, Mp = X.shape
    _, P, Cout, _ = Wpacked.shape
    assert Mp % tm == 0

    return pl.pallas_call(
        _dist_min_kernel,
        out_shape=jax.ShapeDtypeStruct((Cin, Cout, Mp), jnp.float32),
        grid_spec=pltpu.PrefetchScalarGridSpec(
            num_scalar_prefetch=0,
            grid=(Cin, Mp // tm),
            in_specs=[
                pl.BlockSpec((1, D2, tm), lambda c, m: (c, 0, m)),
                pl.BlockSpec((1, P, Cout, D2), lambda c, m: (c, 0, 0, 0)),
            ],
            out_specs=pl.BlockSpec((1, Cout, tm), lambda c, m: (c, 0, m)),
        ),
        compiler_params=pltpu.CompilerParams(
            dimension_semantics=("parallel", "parallel")),
    )(X, Wpacked)


def one_minus_softmax_pallas(x):
    """x: (B, Cout*Cin, N) -> (1 - softmax over N) / N, blocked over B."""
    B, R, N = x.shape
    return pl.pallas_call(
        _one_minus_softmax_kernel,
        out_shape=jax.ShapeDtypeStruct((B, R, N), jnp.float32),
        grid_spec=pltpu.PrefetchScalarGridSpec(
            num_scalar_prefetch=0,
            grid=(B,),
            in_specs=[pl.BlockSpec((1, R, N), lambda b: (b, 0, 0))],
            out_specs=pl.BlockSpec((1, R, N), lambda b: (b, 0, 0)),
        ),
        compiler_params=pltpu.CompilerParams(dimension_semantics=("parallel",)),
    )(x)


def mean_over_subgraphs_pallas(feats_t, n_true, tn):
    """feats_t: (B, F, N_pad) (F on sublanes, N on lanes) -> (B, F) mean over
    the true n_subgraph count."""
    B, Fd, Np = feats_t.shape
    assert Np % tn == 0
    return pl.pallas_call(
        partial(_mean_kernel, inv_n=1.0 / float(n_true)),
        out_shape=jax.ShapeDtypeStruct((B, Fd), jnp.float32),
        grid_spec=pltpu.PrefetchScalarGridSpec(
            num_scalar_prefetch=0,
            grid=(Np // tn,),
            in_specs=[pl.BlockSpec((B, Fd, tn), lambda t: (0, 0, t))],
            out_specs=pl.BlockSpec((B, Fd), lambda t: (0, 0)),
        ),
        compiler_params=pltpu.CompilerParams(dimension_semantics=("arbitrary",)),
    )(feats_t)


# --------------------------------------------------------------------------
# Parameter / permutation setup (plain JAX glue)
# --------------------------------------------------------------------------

def xavier_uniform(key, shape, gain):
    receptive = int(np.prod(shape[2:])) if len(shape) > 2 else 1
    fan_in = shape[1] * receptive
    fan_out = shape[0] * receptive
    bound = gain * math.sqrt(6.0 / (fan_in + fan_out))
    return jax.random.uniform(key, shape, jnp.float32, -bound, bound)


def permutation_matrices(k):
    perm_list = list(permutations(range(k)))
    P = np.zeros((len(perm_list), k, k), dtype=np.float32)
    for c, perm in enumerate(perm_list):
        for i, j in enumerate(perm):
            P[c, i, j] = 1.0
    return jnp.asarray(P)


def init_params(key, out_channel, in_channel, k):
    k1, k2, k3 = jax.random.split(key, 3)
    gain = 1.414
    return {
        "struct": xavier_uniform(k1, (out_channel, in_channel, k, k), gain),
        "row_type": xavier_uniform(k2, (out_channel, in_channel, k, 1), gain),
        "col_type": xavier_uniform(k3, (out_channel, in_channel, k, 1), gain),
    }


# --------------------------------------------------------------------------
# Forward pass (mirrors dilated_iso_layer.forward)
# --------------------------------------------------------------------------

def dilated_iso_forward(params, perms, graph, types, features, h_idx, w_idx,
                        tm=512, tn=2048):
    B, Cin, n, _ = graph.shape
    N, k = h_idx.shape
    Cout = params["struct"].shape[0]
    P = perms.shape[0]
    D = k * k + 2 * k
    D2 = D + 1

    # --- _prepare_random: subgraph extraction (index glue) ---
    Hi = h_idx[:, :, None]                                   # (N, k, 1)
    Wi = w_idx[:, None, :]                                   # (N, 1, k)
    sub = graph[:, :, Hi, Wi]                                # (B, Cin, N, k, k)
    sub = jnp.transpose(sub, (0, 2, 1, 3, 4))                # (B, N, Cin, k, k)
    row_t = jnp.transpose(types[:, :, h_idx], (0, 2, 1, 3))  # (B, N, Cin, k)
    col_t = jnp.transpose(types[:, :, w_idx], (0, 2, 1, 3))  # (B, N, Cin, k)
    row_f = jnp.sum(features[:, h_idx, :], axis=-2)          # (B, N, F)
    col_f = jnp.sum(features[:, w_idx, :], axis=-2)          # (B, N, F)
    feat_sum = row_f + col_f                                 # (B, N, F)

    # --- pack subgraph side lane-major: (Cin, D2, M), M = B*N on lanes ---
    M = B * N
    X = jnp.concatenate([sub.reshape(B, N, Cin, k * k), row_t, col_t], axis=-1)
    X = jnp.transpose(X, (2, 3, 0, 1)).reshape(Cin, D, M)    # (Cin, D, M)
    X = jnp.concatenate([X, jnp.ones((Cin, 1, M), jnp.float32)], axis=1)  # +ones row

    TM = min(tm, _round_up(M, 128))
    M_pad = _round_up(M, TM)
    if M_pad != M:
        X = jnp.pad(X, ((0, 0), (0, 0), (0, M_pad - M)))

    # --- pack kernel side: perms applied, then fold (-2) and ||W||^2 in ---
    Ks = params["struct"]                                    # (Cout, Cin, k, k)
    Kr = params["row_type"][..., 0]                          # (Cout, Cin, k)
    Kc = params["col_type"][..., 0]                          # (Cout, Cin, k)
    PKs = jnp.einsum("pij,ocjl,pml->opcim", perms, Ks, perms)  # (Cout,P,Cin,k,k)
    PKr = jnp.einsum("pij,ocj->opci", perms, Kr)               # (Cout,P,Cin,k)
    PKc = jnp.einsum("pij,ocj->opci", perms, Kc)               # (Cout,P,Cin,k)
    Wfull = jnp.concatenate([PKs.reshape(Cout, P, Cin, k * k), PKr, PKc], axis=-1)
    Wfull = jnp.transpose(Wfull, (2, 1, 0, 3))               # (Cin, P, Cout, D)
    sw = jnp.sum(Wfull * Wfull, axis=-1, keepdims=True)      # (Cin, P, Cout, 1)
    Wpacked = jnp.concatenate([-2.0 * Wfull, sw], axis=-1)   # (Cin, P, Cout, D2)

    # --- Pallas hot path: squared distances, min over permutations ---
    dmin = dist_min_pallas(X, Wpacked, TM)                   # (Cin, Cout, M_pad)
    dmin = dmin[:, :, :M]

    # --- reproduce torch's maxpool/view/transpose ordering exactly ---
    # torch: sim (B, N, Cout, P, Cin) -> min over P -> view (B, N, Cout*Cin)
    #        -> transpose -> (B, Cout*Cin, N)
    sim = dmin.reshape(Cin, Cout, B, N)
    sim = jnp.transpose(sim, (2, 1, 0, 3)).reshape(B, Cout * Cin, N)

    # --- Pallas: (1 - softmax over N) / N ---
    sim = one_minus_softmax_pallas(sim)                      # (B, Cout*Cin, N)

    # --- Pallas: h_mean = mean over subgraphs of (row_f + col_f) ---
    feats_t = jnp.transpose(feat_sum, (0, 2, 1))             # (B, F, N): N on lanes
    TN = min(tn, _round_up(N, 128))
    N_pad = _round_up(N, TN)
    if N_pad != N:
        feats_t = jnp.pad(feats_t, ((0, 0), (0, 0), (0, N_pad - N)))
    h_mean = mean_over_subgraphs_pallas(feats_t, N, TN)      # (B, F)

    return h_mean, sim


# --------------------------------------------------------------------------
# Main
# --------------------------------------------------------------------------

if __name__ == "__main__":
    B, C_in, C_out = 2, 4, 4
    kernel_size = 3
    n_nodes = 16
    feat_dim = 8
    n_subgraph = 512   # torch module uses 10000 random subgraphs; small demo size

    key = jax.random.PRNGKey(0)
    kg, kt, kf, kp = jax.random.split(key, 4)

    graph = jax.random.normal(kg, (B, C_in, n_nodes, n_nodes), jnp.float32)
    types = jax.random.normal(kt, (B, C_in, n_nodes), jnp.float32)
    features = jax.random.normal(kf, (B, n_nodes, feat_dim), jnp.float32)

    params = init_params(kp, C_out, C_in, kernel_size)
    perms = permutation_matrices(kernel_size)

    # TODO(synk): np.random.choice subgraph sampling has no in-kernel equivalent;
    # the random (row, col) index sets are generated deterministically on host.
    rng = np.random.default_rng(0)
    h_idx = jnp.asarray(
        np.stack([rng.choice(n_nodes, size=kernel_size, replace=False)
                  for _ in range(n_subgraph)]), dtype=jnp.int32)
    w_idx = jnp.asarray(
        np.stack([rng.choice(n_nodes, size=kernel_size, replace=False)
                  for _ in range(n_subgraph)]), dtype=jnp.int32)

    h_mean, sim = dilated_iso_forward(params, perms, graph, types, features,
                                      h_idx, w_idx)
    jax.block_until_ready((h_mean, sim))

    assert h_mean.shape == (B, feat_dim)
    assert sim.shape == (B, C_out * C_in, n_subgraph)
    assert bool(jnp.all(jnp.isfinite(h_mean))) and bool(jnp.all(jnp.isfinite(sim)))

    print("KERNEL_OK")
</pallas_src>

<mosaic_0001>
module attributes {stable_mosaic.version = 11 : i64} {
  func.func @_dist_min_kernel(%arg0: i32, %arg1: i32, %arg2: memref<1x16x512xf32, #tpu.memory_space<vmem>>, %arg3: memref<1x6x4x16xf32, #tpu.memory_space<vmem>>, %arg4: memref<1x4x512xf32, #tpu.memory_space<vmem>>) attributes {dimension_semantics = [#tpu.dimension_semantics<parallel>, #tpu.dimension_semantics<parallel>], iteration_bounds = array<i64: 4, 2>, scalar_prefetch = 0 : i64, scratch_operands = 0 : i64, tpu.core_type = #tpu.core_type<tc>, window_params = [{transform_indices = @transform_0, window_bounds = array<i64: 1, 16, 512>}, {transform_indices = @transform_1, window_bounds = array<i64: 1, 6, 4, 16>}, {transform_indices = @transform_2, window_bounds = array<i64: 1, 4, 512>}]} {
    %c0 = arith.constant 0 : index
    %c0_0 = arith.constant 0 : index
    %c0_1 = arith.constant 0 : index
    %0 = vector.load %arg2[%c0, %c0_0, %c0_1] : memref<1x16x512xf32, #tpu.memory_space<vmem>>, vector<1x16x512xf32>
    %1 = vector.shape_cast %0 : vector<1x16x512xf32> to vector<16x512xf32>
    %c0_2 = arith.constant 0 : index
    %c0_3 = arith.constant 0 : index
    %c0_4 = arith.constant 0 : index
    %c0_5 = arith.constant 0 : index
    %2 = vector.load %arg3[%c0_2, %c0_3, %c0_4, %c0_5] : memref<1x6x4x16xf32, #tpu.memory_space<vmem>>, vector<1x6x4x16xf32>
    %3 = vector.shape_cast %2 : vector<1x6x4x16xf32> to vector<6x4x16xf32>
    %4 = vector.extract_strided_slice %3 {offsets = [0, 0, 0], sizes = [1, 4, 16], strides = [1, 1, 1]} : vector<6x4x16xf32> to vector<1x4x16xf32>
    %5 = vector.shape_cast %4 : vector<1x4x16xf32> to vector<4x16xf32>
    %cst = arith.constant dense<0.000000e+00> : vector<4x512xf32>
    %6 = tpu.matmul %5, %1, %cst {dimension_numbers = #tpu.dot_dimension_numbers<[1], [0], [0], [1], [0, 0, 1, 1], [], []>} : vector<4x16xf32>, vector<16x512xf32>, vector<4x512xf32> -> vector<4x512xf32>
    %7 = vector.extract_strided_slice %3 {offsets = [1, 0, 0], sizes = [1, 4, 16], strides = [1, 1, 1]} : vector<6x4x16xf32> to vector<1x4x16xf32>
    %8 = vector.shape_cast %7 : vector<1x4x16xf32> to vector<4x16xf32>
    %cst_6 = arith.constant dense<0.000000e+00> : vector<4x512xf32>
    %9 = tpu.matmul %8, %1, %cst_6 {dimension_numbers = #tpu.dot_dimension_numbers<[1], [0], [0], [1], [0, 0, 1, 1], [], []>} : vector<4x16xf32>, vector<16x512xf32>, vector<4x512xf32> -> vector<4x512xf32>
    %10 = arith.minimumf %6, %9 : vector<4x512xf32>
    %11 = vector.extract_strided_slice %3 {offsets = [2, 0, 0], sizes = [1, 4, 16], strides = [1, 1, 1]} : vector<6x4x16xf32> to vector<1x4x16xf32>
    %12 = vector.shape_cast %11 : vector<1x4x16xf32> to vector<4x16xf32>
    %cst_7 = arith.constant dense<0.000000e+00> : vector<4x512xf32>
    %13 = tpu.matmul %12, %1, %cst_7 {dimension_numbers = #tpu.dot_dimension_numbers<[1], [0], [0], [1], [0, 0, 1, 1], [], []>} : vector<4x16xf32>, vector<16x512xf32>, vector<4x512xf32> -> vector<4x512xf32>
    %14 = arith.minimumf %10, %13 : vector<4x512xf32>
    %15 = vector.extract_strided_slice %3 {offsets = [3, 0, 0], sizes = [1, 4, 16], strides = [1, 1, 1]} : vector<6x4x16xf32> to vector<1x4x16xf32>
    %16 = vector.shape_cast %15 : vector<1x4x16xf32> to vector<4x16xf32>
    %cst_8 = arith.constant dense<0.000000e+00> : vector<4x512xf32>
    %17 = tpu.matmul %16, %1, %cst_8 {dimension_numbers = #tpu.dot_dimension_numbers<[1], [0], [0], [1], [0, 0, 1, 1], [], []>} : vector<4x16xf32>, vector<16x512xf32>, vector<4x512xf32> -> vector<4x512xf32>
    %18 = arith.minimumf %14, %17 : vector<4x512xf32>
    %19 = vector.extract_strided_slice %3 {offsets = [4, 0, 0], sizes = [1, 4, 16], strides = [1, 1, 1]} : vector<6x4x16xf32> to vector<1x4x16xf32>
    %20 = vector.shape_cast %19 : vector<1x4x16xf32> to vector<4x16xf32>
    %cst_9 = arith.constant dense<0.000000e+00> : vector<4x512xf32>
    %21 = tpu.matmul %20, %1, %cst_9 {dimension_numbers = #tpu.dot_dimension_numbers<[1], [0], [0], [1], [0, 0, 1, 1], [], []>} : vector<4x16xf32>, vector<16x512xf32>, vector<4x512xf32> -> vector<4x512xf32>
    %22 = arith.minimumf %18, %21 : vector<4x512xf32>
    %23 = vector.extract_strided_slice %3 {offsets = [5, 0, 0], sizes = [1, 4, 16], strides = [1, 1, 1]} : vector<6x4x16xf32> to vector<1x4x16xf32>
    %24 = vector.shape_cast %23 : vector<1x4x16xf32> to vector<4x16xf32>
    %cst_10 = arith.constant dense<0.000000e+00> : vector<4x512xf32>
    %25 = tpu.matmul %24, %1, %cst_10 {dimension_numbers = #tpu.dot_dimension_numbers<[1], [0], [0], [1], [0, 0, 1, 1], [], []>} : vector<4x16xf32>, vector<16x512xf32>, vector<4x512xf32> -> vector<4x512xf32>
    %26 = arith.minimumf %22, %25 : vector<4x512xf32>
    %27 = arith.mulf %1, %1 : vector<16x512xf32>
    %cst_11 = arith.constant dense<0.000000e+00> : vector<512xf32>
    %28 = vector.multi_reduction <add>, %27, %cst_11 [0] : vector<16x512xf32> to vector<512xf32>
    %29 = vector.shape_cast %28 : vector<512xf32> to vector<1x512xf32>
    %cst_12 = arith.constant 1.000000e+00 : f32
    %30 = vector.broadcast %cst_12 : f32 to vector<1x512xf32>
    %31 = arith.subf %29, %30 : vector<1x512xf32>
    %32 = vector.broadcast %31 : vector<1x512xf32> to vector<4x512xf32>
    %33 = arith.addf %26, %32 : vector<4x512xf32>
    %c0_13 = arith.constant 0 : index
    %c0_14 = arith.constant 0 : index
    %c0_15 = arith.constant 0 : index
    %34 = vector.load %arg4[%c0_13, %c0_14, %c0_15] : memref<1x4x512xf32, #tpu.memory_space<vmem>>, vector<1x4x512xf32>
    %35 = vector.shape_cast %34 : vector<1x4x512xf32> to vector<4x512xf32>
    %36 = vector.shape_cast %33 : vector<4x512xf32> to vector<1x4x512xf32>
    tpu.vector_store %arg4[%c0_13, %c0_14, %c0_15], %36 {strides = array<i32>} : memref<1x4x512xf32, #tpu.memory_space<vmem>>, vector<1x4x512xf32>,
    return
  }
  func.func @transform_0(%arg0: i32, %arg1: i32) -> (i32, i32, i32) {
    %c0_i32 = arith.constant 0 : i32
    %c0_i32_0 = arith.constant 0 : i32
    return %arg0, %c0_i32, %arg1 : i32, i32, i32
  }
  func.func @transform_1(%arg0: i32, %arg1: i32) -> (i32, i32, i32, i32) {
    %c0_i32 = arith.constant 0 : i32
    %c0_i32_0 = arith.constant 0 : i32
    %c0_i32_1 = arith.constant 0 : i32
    %c0_i32_2 = arith.constant 0 : i32
    return %arg0, %c0_i32, %c0_i32_0, %c0_i32_1 : i32, i32, i32, i32
  }
  func.func @transform_2(%arg0: i32, %arg1: i32) -> (i32, i32, i32) {
    %c0_i32 = arith.constant 0 : i32
    %c0_i32_0 = arith.constant 0 : i32
    return %arg0, %c0_i32, %arg1 : i32, i32, i32
  }
}

</mosaic_0001>

<llo_original>
// kernel: tpu_custom_call.1
$region0: #{tpu_custom_call.1}
  #allocation0 [shape = 'u32[]', space=smem, size = 0x4, offset = 0x4, fixed_abs, tag = 'smem constant byte address 0x4 - core index']
  #allocation1 [shape = 'u32[72,128]{1,0:T(1,128)}', space=vmem, size = 0x9000, scoped, tag = 'internal scratch']
  %s0 = inlined_call_operand.hbm [shape: f32[4,16,1024], index: 0, kind: input, shape index: {}]
  %s1 = inlined_call_operand.hbm [shape: f32[4,6,4,16], index: 1, kind: input, shape index: {}]
  %s2 = inlined_call_operand.hbm [shape: f32[4,4,1024], index: 2, kind: output, shape index: {}]
  %s3 = sld [smem:[#allocation0]]
  $region49: #{tpu_custom_call.1} parent=0
    _
  %s5 = ssub.s32 1, %s3
  %s6 = scalar_select 0, %s5, %s3
  $region1: #{tpu_custom_call.1} parent=0
    #allocation2 [shape = 'u8[65536]{0}', space=vmem, size = 0x10000, scoped, tag = 'input window, operand 0']
    #allocation3 [shape = 's32[2]{0}', space=sflag, size = 0x8, scoped, tag = 'scoped memory for tpu_custom_call.1']
    #allocation4 [shape = 's32[2]{0}', space=sflag, size = 0x8, scoped, tag = 'scoped memory for tpu_custom_call.1']
    #allocation5 [shape = 'u8[24576]{0}', space=vmem, size = 0x6000, scoped, tag = 'input window, operand 1']
    #allocation6 [shape = 's32[2]{0}', space=sflag, size = 0x8, scoped, tag = 'scoped memory for tpu_custom_call.1']
    #allocation7 [shape = 'u8[16384]{0}', space=vmem, size = 0x4000, scoped, tag = 'output window, operand 0']
    %7 = vsyncpa [#allocation3], 0
    %s8 = scalar_lea.sflag [#allocation3], 1
    %9 = vsyncpa %s8, 0
    %10 = vsyncpa [#allocation6], 0
    %s11 = scalar_lea.sflag [#allocation6], 1
    %12 = vsyncpa %s11, 0
    %13 = vsyncpa [#allocation4], 0
    %s14 = scalar_lea.sflag [#allocation4], 1
    %15 = vsyncpa %s14, 0
    loop: start=0, step=1, limit=10
    $region2: #{tpu_custom_call.1} parent=1 // loop_pre_header
      _
    $region3: #{tpu_custom_call.1} parent=1 // loop_header
      %s17 = sphi 0, %s21
      %p18 = scmp.ge.s32.totalorder %s17, 10
      %s24 = sphi 0, %s36
      %s25 = sphi 0, %s32
      %s26 = sphi 0, %s24
      %s27 = sphi 0, %s25
      %s28 = sphi 0, %s26
      %s29 = sphi 0, %s27
      %s41 = sphi 0, %s43
      %s44 = sphi 0, %s41
      %s45 = sphi 0, %s44
      %s61 = sphi 0, %s45
      %s67 = sphi 0, %s69
      %s70 = sphi 0, %s67
      %s71 = sphi 0, %s70
      %s87 = sphi 0, %s71
      %s95 = sphi 0, %s97
      %s98 = sphi 0, %s95
      %s99 = sphi 0, %s98
      %s115 = sphi 0, %s99
    $region4: #{tpu_custom_call.1} parent=1 // loop_header_branch
      %20 = sbr.rel (%p18) target = $region8
    $region5: #{tpu_custom_call.1} parent=1 // loop_body
      %s22 = ssub.s32 %s17, 1
      %s23 = ssub.s32 %s17, 2
      %s30 = sadd.s32 1, %s25
      %p31 = scmp.ge.s32.totalorder %s30, 2
      %s32 = scalar_select %p31, 0, %s30
      %s33 = sadd.s32 1, %s24
      %s34 = scalar_select %p31, %s33, %s24
      %p35 = scmp.ge.s32.totalorder %s34, 4
      %s36 = scalar_select %p35, 0, %s34
      %s37 = ssub.s32 %s24, %s36
      %s38 = ssub.s32 %s25, %s32
      %s39 = sor.u32 %s37, %s38
      %p40 = scmp.eq.s32.totalorder %s39, 0
      %s42 = sadd.s32 %s41, 1
      %s43 = scalar_select %p40, %s41, %s42
      %p46 = pneg %p40
      %p47 = scmp.eq.s32.totalorder %s17, 7
      %p48 = por %p46, %p47
      %p49 = scmp.ne.s32.totalorder %s41, %s44
      %p50 = scmp.eq.s32.totalorder %s17, 0
      %p51 = por %p49, %p50
      %p52 = scmp.ne.s32.totalorder %s41, %s44
      %p53 = scmp.eq.s32.totalorder %s22, 7
      %p54 = por %p52, %p53
      %p55 = scmp.ne.s32.totalorder %s44, %s45
      %p56 = scmp.eq.s32.totalorder %s22, 0
      %p57 = por %p55, %p56
      %p58 = scmp.ne.s32.totalorder %s44, %s45
      %p59 = scmp.eq.s32.totalorder %s23, 7
      %p60 = por %p58, %p59
      %p62 = scmp.ne.s32.totalorder %s45, %s61
      %p63 = scmp.eq.s32.totalorder %s23, 0
      %p64 = por %p62, %p63
      %s65 = ssub.s32 %s24, %s36
      %p66 = scmp.eq.s32.totalorder %s65, 0
      %s68 = sadd.s32 %s67, 1
      %s69 = scalar_select %p66, %s67, %s68
      %p72 = pneg %p66
      %p73 = scmp.eq.s32.totalorder %s17, 7
      %p74 = por %p72, %p73
      %p75 = scmp.ne.s32.totalorder %s67, %s70
      %p76 = scmp.eq.s32.totalorder %s17, 0
      %p77 = por %p75, %p76
      %p78 = scmp.ne.s32.totalorder %s67, %s70
      %p79 = scmp.eq.s32.totalorder %s22, 7
      %p80 = por %p78, %p79
      %p81 = scmp.ne.s32.totalorder %s70, %s71
      %p82 = scmp.eq.s32.totalorder %s22, 0
      %p83 = por %p81, %p82
      %p84 = scmp.ne.s32.totalorder %s70, %s71
      %p85 = scmp.eq.s32.totalorder %s23, 7
      %p86 = por %p84, %p85
      %p88 = scmp.ne.s32.totalorder %s71, %s87
      %p89 = scmp.eq.s32.totalorder %s23, 0
      %p90 = por %p88, %p89
      %s91 = ssub.s32 %s24, %s36
      %s92 = ssub.s32 %s25, %s32
      %s93 = sor.u32 %s91, %s92
      %p94 = scmp.eq.s32.totalorder %s93, 0
      %s96 = sadd.s32 %s95, 1
      %s97 = scalar_select %p94, %s95, %s96
      %p100 = pneg %p94
      %p101 = scmp.eq.s32.totalorder %s17, 7
      %p102 = por %p100, %p101
      %p103 = scmp.ne.s32.totalorder %s95, %s98
      %p104 = scmp.eq.s32.totalorder %s17, 0
      %p105 = por %p103, %p104
      %p106 = scmp.ne.s32.totalorder %s95, %s98
      %p107 = scmp.eq.s32.totalorder %s22, 7
      %p108 = por %p106, %p107
      %p109 = scmp.ne.s32.totalorder %s98, %s99
      %p110 = scmp.eq.s32.totalorder %s22, 0
      %p111 = por %p109, %p110
      %p112 = scmp.ne.s32.totalorder %s98, %s99
      %p113 = scmp.eq.s32.totalorder %s23, 7
      %p114 = por %p112, %p113
      %p116 = scmp.ne.s32.totalorder %s99, %s115
      %p117 = scmp.eq.s32.totalorder %s23, 0
      %p118 = por %p116, %p117
      %p119 = scmp.le.s32.totalorder 1, %s17
      %p120 = scmp.lt.s32.totalorder %s17, 9
      %p121 = pnand %p119, %p120
      %p122 = pneg %p121
      // Predicated region
      $region9: #{tpu_custom_call.1} parent=5 // pred_check
        _
      $region10: #{tpu_custom_call.1} parent=5 // pred_check_branch
        %124 = sbr.rel (%p121) target = $region12
      $region11: #{tpu_custom_call.1} parent=5 // pred_region
        %s125 = ssub.s32 %s17, 1
      $region12: #{tpu_custom_call.1} parent=5 // pred_fallthru
        _
      %p126 = scmp.lt.s32.totalorder %s17, 8
      // Predicated region
      $region13: #{tpu_custom_call.1} parent=5 // pred_check
        %p127 = pneg %p126
      $region14: #{tpu_custom_call.1} parent=5 // pred_check_branch
        %129 = sbr.rel (%p127) target = $region16
      $region15: #{tpu_custom_call.1} parent=5 // pred_region
        // Predicated region
        $region17: #{tpu_custom_call.1} parent=15 // pred_check
          %p130 = pneg %p51
        $region18: #{tpu_custom_call.1} parent=15 // pred_check_branch
          %132 = sbr.rel (%p130) target = $region20
        $region19: #{tpu_custom_call.1} parent=15 // pred_region
          %s133 = sand.u32 %s41, 1
          %s134 = scalar_lea.sflag [#allocation3], %s133
          %s135 = sand.u32 %s41, 1
          %s136 = smul.addr %s135, 64
          %s137 = scalar_lea.vmem [#allocation2], %s136
          %s138 = smul.u32 4, %s25
          %140 = vsyncadd %s134, 0
          %s141 = smul.addr %s24, 16
          %s142 = sadd.s32 %s138, %s141
          %s143 = smul.addr %s142, 8
          %s144 = scalar_lea.hbm %s0, %s143
          %s145 = sshll.u32 %s144, 4
          %s146 = int_to_ptr.hbm [resolvable:$true] %s145
          %s147 = sshll.u32 %s137, 4
          %s148 = int_to_ptr.vmem [resolvable:$true] %s147
          %153 = dma.hbm_to_vmem [thread:$0]  %s146, 1024, %s148, %s134, 1024, 512, 32
        $region20: #{tpu_custom_call.1} parent=15 // pred_fallthru
          _
        // Predicated region
        $region21: #{tpu_custom_call.1} parent=15 // pred_check
          %p154 = pneg %p77
        $region22: #{tpu_custom_call.1} parent=15 // pred_check_branch
          %156 = sbr.rel (%p154) target = $region24
        $region23: #{tpu_custom_call.1} parent=15 // pred_region
          %s157 = sand.u32 %s67, 1
          %s158 = scalar_lea.sflag [#allocation6], %s157
          %s159 = sand.u32 %s67, 1
          %s160 = smul.addr %s159, 24
          %s161 = scalar_lea.vmem [#allocation5], %s160
          %163 = vsyncadd %s158, 0
          %s164 = smul.addr %s24, 6
          %s165 = smul.addr %s164, 4
          %s166 = scalar_lea.hbm %s1, %s165
          %s167 = sshll.u32 %s166, 4
          %s168 = int_to_ptr.hbm [resolvable:$true] %s167
          %s169 = sshll.u32 %s161, 4
          %s170 = int_to_ptr.vmem [resolvable:$true] %s169
          %175 = dma.hbm_to_vmem [thread:$0]  %s168, 384, %s170, %s158, 64, 64, 4
        $region24: #{tpu_custom_call.1} parent=15 // pred_fallthru
          _
      $region16: #{tpu_custom_call.1} parent=5 // pred_fallthru
        _
      %p176 = scmp.le.s32.totalorder 1, %s17
      %p177 = scmp.lt.s32.totalorder %s17, 9
      %p178 = pnand %p176, %p177
      %p179 = pneg %p178
      // Predicated region
      $region25: #{tpu_custom_call.1} parent=5 // pred_check
        _
      $region26: #{tpu_custom_call.1} parent=5 // pred_check_branch
        %181 = sbr.rel (%p178) target = $region28
      $region27: #{tpu_custom_call.1} parent=5 // pred_region
        %s182 = ssub.s32 %s17, 1
        %s183 = sand.u32 %s44, 1
        %s184 = scalar_lea.sflag [#allocation3], %s183
        %s185 = sand.u32 %s44, 1
        %s186 = smul.addr %s185, 64
        %s187 = scalar_lea.vmem [#allocation2], %s186
        // Predicated region
        $region29: #{tpu_custom_call.1} parent=27 // pred_check
          %p188 = pneg %p57
        $region30: #{tpu_custom_call.1} parent=27 // pred_check_branch
          %190 = sbr.rel (%p188) target = $region32
        $region31: #{tpu_custom_call.1} parent=27 // pred_region
          %192 = dma.done %s184, 1024
        $region32: #{tpu_custom_call.1} parent=27 // pred_fallthru
          _
        %s193 = sand.u32 %s70, 1
        %s194 = scalar_lea.sflag [#allocation6], %s193
        %s195 = sand.u32 %s70, 1
        %s196 = smul.addr %s195, 24
        %s197 = scalar_lea.vmem [#allocation5], %s196
        // Predicated region
        $region33: #{tpu_custom_call.1} parent=27 // pred_check
          %p198 = pneg %p83
        $region34: #{tpu_custom_call.1} parent=27 // pred_check_branch
          %200 = sbr.rel (%p198) target = $region36
        $region35: #{tpu_custom_call.1} parent=27 // pred_region
          %202 = dma.done %s194, 384
        $region36: #{tpu_custom_call.1} parent=27 // pred_fallthru
          _
        %s203 = sand.u32 %s44, 1
        %s204 = scalar_lea.sflag [#allocation3], %s203
        %s205 = sand.u32 %s44, 1
        %s206 = smul.addr %s205, 64
        %s207 = scalar_lea.vmem [#allocation2], %s206
        %p208 = pneg %p57
        %p209 = pneg %p54
        %s210 = sand.u32 %s70, 1
        %s211 = scalar_lea.sflag [#allocation6], %s210
        %s212 = sand.u32 %s70, 1
        %s213 = smul.addr %s212, 24
        %s214 = scalar_lea.vmem [#allocation5], %s213
        %p215 = pneg %p83
        %p216 = pneg %p80
        %p217 = pneg %p111
        %p218 = pneg %p108
        %s219 = sand.u32 %s98, 1
        %s220 = scalar_lea.sflag [#allocation4], %s219
        %s221 = sand.u32 %s98, 1
        %s222 = smul.addr %s221, 16
        %s223 = scalar_lea.vmem [#allocation7], %s222
        %s224 = smul.u32 4, %s27
        %s225 = smul.u32 4, %s27
        %v226 = vld [vmem:[%s187] sm:$0xff]
        %v227 = vld [vmem:[%s187 + $0x8] sm:$0xff]
        %v228 = vld [vmem:[%s187 + $0x10] sm:$0xff]
        %v229 = vld [vmem:[%s187 + $0x18] sm:$0xff]
        %v230 = vld [vmem:[%s187 + $0x20] sm:$0xff]
        %v231 = vld [vmem:[%s187 + $0x28] sm:$0xff]
        %v232 = vld [vmem:[%s187 + $0x30] sm:$0xff]
        %v233 = vld [vmem:[%s187 + $0x38] sm:$0xff]
        %v234 = vld [vmem:[%s197] sm:$0xf]
        %v235 = vld [vmem:[%s197 + $0x4] sm:$0xf]
        %v236 = vld [vmem:[%s197 + $0x8] sm:$0xf]
        %v237 = vld [vmem:[%s197 + $0xc] sm:$0xf]
        %v238 = vld [vmem:[%s197 + $0x10] sm:$0xf]
        %v239 = vld [vmem:[%s197 + $0x14] sm:$0xf]
        %vm240 = vcmask 130048
        %v242 = vsel %vm240, %v234, 0
        %244 = vmatpush.msra.mxu0 0.0
        %245 = vmatpush.msra.mxu0 0.0
        %246 = vmatpush.msra.mxu0 0.0
        %247 = vmatpush.msra.mxu0 0.0
        %248 = vmatpush.msra.mxu0 0.0
        %249 = vmatpush.msra.mxu0 0.0
        %250 = vmatpush.msra.mxu0 0.0
        %251 = vmatpush.msra.mxu0 0.0
        %252 = vmatpush.msra.mxu0 0.0
        %253 = vmatpush.msra.mxu0 0.0
        %254 = vmatpush.msra.mxu0 0.0
        %255 = vmatpush.msra.mxu0 0.0
        %256 = vmatpush.msra.mxu0 0.0
        %257 = vmatpush.msra.mxu0 0.0
        %258 = vmatpush.msra.mxu0 %v230
        %259 = vmatpush.msra.mxu0 %v226
        %260 = vmatmul.f32.gmra.mxu0 %v242
        %v261 = vpop.f32.mrf.mxu0
        %v262 = vadd.f32 0.0, %v261
        %263 = vdwg.mxu0
        %264 = vmatpush.msra.mxu0 0.0
        %265 = vmatpush.msra.mxu0 0.0
        %266 = vmatpush.msra.mxu0 0.0
        %267 = vmatpush.msra.mxu0 0.0
        %268 = vmatpush.msra.mxu0 0.0
        %269 = vmatpush.msra.mxu0 0.0
        %270 = vmatpush.msra.mxu0 0.0
        %271 = vmatpush.msra.mxu0 0.0
        %272 = vmatpush.msra.mxu0 0.0
        %273 = vmatpush.msra.mxu0 0.0
        %274 = vmatpush.msra.mxu0 0.0
        %275 = vmatpush.msra.mxu0 0.0
        %276 = vmatpush.msra.mxu0 0.0
        %277 = vmatpush.msra.mxu0 0.0
        %278 = vmatpush.msra.mxu0 %v231
        %279 = vmatpush.msra.mxu0 %v227
        %280 = vmatmul.f32.gmra.mxu0 %v242
        %v281 = vpop.f32.mrf.mxu0
        %v282 = vadd.f32 0.0, %v281
        %283 = vdwg.mxu0
        %284 = vmatpush.msra.mxu0 0.0
        %285 = vmatpush.msra.mxu0 0.0
        %286 = vmatpush.msra.mxu0 0.0
        %287 = vmatpush.msra.mxu0 0.0
        %288 = vmatpush.msra.mxu0 0.0
        %289 = vmatpush.msra.mxu0 0.0
        %290 = vmatpush.msra.mxu0 0.0
        %291 = vmatpush.msra.mxu0 0.0
        %292 = vmatpush.msra.mxu0 0.0
        %293 = vmatpush.msra.mxu0 0.0
        %294 = vmatpush.msra.mxu0 0.0
        %295 = vmatpush.msra.mxu0 0.0
        %296 = vmatpush.msra.mxu0 0.0
        %297 = vmatpush.msra.mxu0 0.0
        %298 = vmatpush.msra.mxu0 %v232
        %299 = vmatpush.msra.mxu0 %v228
        %300 = vmatmul.f32.gmra.mxu0 %v242
        %v301 = vpop.f32.mrf.mxu0
        %v302 = vadd.f32 0.0, %v301
        %303 = vdwg.mxu0
        %304 = vmatpush.msra.mxu0 0.0
        %305 = vmatpush.msra.mxu0 0.0
        %306 = vmatpush.msra.mxu0 0.0
        %307 = vmatpush.msra.mxu0 0.0
        %308 = vmatpush.msra.mxu0 0.0
        %309 = vmatpush.msra.mxu0 0.0
        %310 = vmatpush.msra.mxu0 0.0
        %311 = vmatpush.msra.mxu0 0.0
        %312 = vmatpush.msra.mxu0 0.0
        %313 = vmatpush.msra.mxu0 0.0
        %314 = vmatpush.msra.mxu0 0.0
        %315 = vmatpush.msra.mxu0 0.0
        %316 = vmatpush.msra.mxu0 0.0
        %317 = vmatpush.msra.mxu0 0.0
        %318 = vmatpush.msra.mxu0 %v233
        %319 = vmatpush.msra.mxu0 %v229
        %320 = vmatmul.f32.gmra.mxu0 %v242
        %v321 = vpop.f32.mrf.mxu0
        %v322 = vadd.f32 0.0, %v321
        %323 = vdwg.mxu0
        %v325 = vsel %vm240, %v235, 0
        %327 = vmatpush.msra.mxu0 0.0
        %328 = vmatpush.msra.mxu0 0.0
        %329 = vmatpush.msra.mxu0 0.0
        %330 = vmatpush.msra.mxu0 0.0
        %331 = vmatpush.msra.mxu0 0.0
        %332 = vmatpush.msra.mxu0 0.0
        %333 = vmatpush.msra.mxu0 0.0
        %334 = vmatpush.msra.mxu0 0.0
        %335 = vmatpush.msra.mxu0 0.0
        %336 = vmatpush.msra.mxu0 0.0
        %337 = vmatpush.msra.mxu0 0.0
        %338 = vmatpush.msra.mxu0 0.0
        %339 = vmatpush.msra.mxu0 0.0
        %340 = vmatpush.msra.mxu0 0.0
        %341 = vmatpush.msra.mxu0 %v230
        %342 = vmatpush.msra.mxu0 %v226
        %343 = vmatmul.f32.gmra.mxu0 %v325
        %v344 = vpop.f32.mrf.mxu0
        %v345 = vadd.f32 0.0, %v344
        %346 = vdwg.mxu0
        %347 = vmatpush.msra.mxu0 0.0
        %348 = vmatpush.msra.mxu0 0.0
        %349 = vmatpush.msra.mxu0 0.0
        %350 = vmatpush.msra.mxu0 0.0
        %351 = vmatpush.msra.mxu0 0.0
        %352 = vmatpush.msra.mxu0 0.0
        %353 = vmatpush.msra.mxu0 0.0
        %354 = vmatpush.msra.mxu0 0.0
        %355 = vmatpush.msra.mxu0 0.0
        %356 = vmatpush.msra.mxu0 0.0
        %357 = vmatpush.msra.mxu0 0.0
        %358 = vmatpush.msra.mxu0 0.0
        %359 = vmatpush.msra.mxu0 0.0
        %360 = vmatpush.msra.mxu0 0.0
        %361 = vmatpush.msra.mxu0 %v231
        %362 = vmatpush.msra.mxu0 %v227
        %363 = vmatmul.f32.gmra.mxu0 %v325
        %v364 = vpop.f32.mrf.mxu0
        %v365 = vadd.f32 0.0, %v364
        %366 = vdwg.mxu0
        %367 = vmatpush.msra.mxu0 0.0
        %368 = vmatpush.msra.mxu0 0.0
        %369 = vmatpush.msra.mxu0 0.0
        %370 = vmatpush.msra.mxu0 0.0
        %371 = vmatpush.msra.mxu0 0.0
        %372 = vmatpush.msra.mxu0 0.0
        %373 = vmatpush.msra.mxu0 0.0
        %374 = vmatpush.msra.mxu0 0.0
        %375 = vmatpush.msra.mxu0 0.0
        %376 = vmatpush.msra.mxu0 0.0
        %377 = vmatpush.msra.mxu0 0.0
        %378 = vmatpush.msra.mxu0 0.0
        %379 = vmatpush.msra.mxu0 0.0
        %380 = vmatpush.msra.mxu0 0.0
        %381 = vmatpush.msra.mxu0 %v232
        %382 = vmatpush.msra.mxu0 %v228
        %383 = vmatmul.f32.gmra.mxu0 %v325
        %v384 = vpop.f32.mrf.mxu0
        %v385 = vadd.f32 0.0, %v384
        %386 = vdwg.mxu0
        %387 = vmatpush.msra.mxu0 0.0
        %388 = vmatpush.msra.mxu0 0.0
        %389 = vmatpush.msra.mxu0 0.0
        %390 = vmatpush.msra.mxu0 0.0
        %391 = vmatpush.msra.mxu0 0.0
        %392 = vmatpush.msra.mxu0 0.0
        %393 = vmatpush.msra.mxu0 0.0
        %394 = vmatpush.msra.mxu0 0.0
        %395 = vmatpush.msra.mxu0 0.0
        %396 = vmatpush.msra.mxu0 0.0
        %397 = vmatpush.msra.mxu0 0.0
        %398 = vmatpush.msra.mxu0 0.0
        %399 = vmatpush.msra.mxu0 0.0
        %400 = vmatpush.msra.mxu0 0.0
        %401 = vmatpush.msra.mxu0 %v233
        %402 = vmatpush.msra.mxu0 %v229
        %403 = vmatmul.f32.gmra.mxu0 %v325
        %v404 = vpop.f32.mrf.mxu0
        %v405 = vadd.f32 0.0, %v404
        %406 = vdwg.mxu0
        %v407 = vmin.f32 %v262, %v345
        %v408 = vmin.f32 %v282, %v365
        %v409 = vmin.f32 %v302, %v385
        %v410 = vmin.f32 %v322, %v405
        %v412 = vsel %vm240, %v236, 0
        %414 = vmatpush.msra.mxu0 0.0
        %415 = vmatpush.msra.mxu0 0.0
        %416 = vmatpush.msra.mxu0 0.0
        %417 = vmatpush.msra.mxu0 0.0
        %418 = vmatpush.msra.mxu0 0.0
        %419 = vmatpush.msra.mxu0 0.0
        %420 = vmatpush.msra.mxu0 0.0
        %421 = vmatpush.msra.mxu0 0.0
        %422 = vmatpush.msra.mxu0 0.0
        %423 = vmatpush.msra.mxu0 0.0
        %424 = vmatpush.msra.mxu0 0.0
        %425 = vmatpush.msra.mxu0 0.0
        %426 = vmatpush.msra.mxu0 0.0
        %427 = vmatpush.msra.mxu0 0.0
        %428 = vmatpush.msra.mxu0 %v230
        %429 = vmatpush.msra.mxu0 %v226
        %430 = vmatmul.f32.gmra.mxu0 %v412
        %v431 = vpop.f32.mrf.mxu0
        %v432 = vadd.f32 0.0, %v431
        %433 = vdwg.mxu0
        %434 = vmatpush.msra.mxu0 0.0
        %435 = vmatpush.msra.mxu0 0.0
        %436 = vmatpush.msra.mxu0 0.0
        %437 = vmatpush.msra.mxu0 0.0
        %438 = vmatpush.msra.mxu0 0.0
        %439 = vmatpush.msra.mxu0 0.0
        %440 = vmatpush.msra.mxu0 0.0
        %441 = vmatpush.msra.mxu0 0.0
        %442 = vmatpush.msra.mxu0 0.0
        %443 = vmatpush.msra.mxu0 0.0
        %444 = vmatpush.msra.mxu0 0.0
        %445 = vmatpush.msra.mxu0 0.0
        %446 = vmatpush.msra.mxu0 0.0
        %447 = vmatpush.msra.mxu0 0.0
        %448 = vmatpush.msra.mxu0 %v231
        %449 = vmatpush.msra.mxu0 %v227
        %450 = vmatmul.f32.gmra.mxu0 %v412
        %v451 = vpop.f32.mrf.mxu0
        %v452 = vadd.f32 0.0, %v451
        %453 = vdwg.mxu0
        %454 = vmatpush.msra.mxu0 0.0
        %455 = vmatpush.msra.mxu0 0.0
        %456 = vmatpush.msra.mxu0 0.0
        %457 = vmatpush.msra.mxu0 0.0
        %458 = vmatpush.msra.mxu0 0.0
        %459 = vmatpush.msra.mxu0 0.0
        %460 = vmatpush.msra.mxu0 0.0
        %461 = vmatpush.msra.mxu0 0.0
        %462 = vmatpush.msra.mxu0 0.0
        %463 = vmatpush.msra.mxu0 0.0
        %464 = vmatpush.msra.mxu0 0.0
        %465 = vmatpush.msra.mxu0 0.0
        %466 = vmatpush.msra.mxu0 0.0
        %467 = vmatpush.msra.mxu0 0.0
        %468 = vmatpush.msra.mxu0 %v232
        %469 = vmatpush.msra.mxu0 %v228
        %470 = vmatmul.f32.gmra.mxu0 %v412
        %v471 = vpop.f32.mrf.mxu0
        %v472 = vadd.f32 0.0, %v471
        %473 = vdwg.mxu0
        %474 = vmatpush.msra.mxu0 0.0
        %475 = vmatpush.msra.mxu0 0.0
        %476 = vmatpush.msra.mxu0 0.0
        %477 = vmatpush.msra.mxu0 0.0
        %478 = vmatpush.msra.mxu0 0.0
        %479 = vmatpush.msra.mxu0 0.0
        %480 = vmatpush.msra.mxu0 0.0
        %481 = vmatpush.msra.mxu0 0.0
        %482 = vmatpush.msra.mxu0 0.0
        %483 = vmatpush.msra.mxu0 0.0
        %484 = vmatpush.msra.mxu0 0.0
        %485 = vmatpush.msra.mxu0 0.0
        %486 = vmatpush.msra.mxu0 0.0
        %487 = vmatpush.msra.mxu0 0.0
        %488 = vmatpush.msra.mxu0 %v233
        %489 = vmatpush.msra.mxu0 %v229
        %490 = vmatmul.f32.gmra.mxu0 %v412
        %v491 = vpop.f32.mrf.mxu0
        %v492 = vadd.f32 0.0, %v491
        %493 = vdwg.mxu0
        %v494 = vmin.f32 %v407, %v432
        %v495 = vmin.f32 %v408, %v452
        %v496 = vmin.f32 %v409, %v472
        %v497 = vmin.f32 %v410, %v492
        %v499 = vsel %vm240, %v237, 0
        %501 = vmatpush.msra.mxu0 0.0
        %502 = vmatpush.msra.mxu0 0.0
        %503 = vmatpush.msra.mxu0 0.0
        %504 = vmatpush.msra.mxu0 0.0
        %505 = vmatpush.msra.mxu0 0.0
        %506 = vmatpush.msra.mxu0 0.0
        %507 = vmatpush.msra.mxu0 0.0
        %508 = vmatpush.msra.mxu0 0.0
        %509 = vmatpush.msra.mxu0 0.0
        %510 = vmatpush.msra.mxu0 0.0
        %511 = vmatpush.msra.mxu0 0.0
        %512 = vmatpush.msra.mxu0 0.0
        %513 = vmatpush.msra.mxu0 0.0
        %514 = vmatpush.msra.mxu0 0.0
        %515 = vmatpush.msra.mxu0 %v230
        %516 = vmatpush.msra.mxu0 %v226
        %517 = vmatmul.f32.gmra.mxu0 %v499
        %v518 = vpop.f32.mrf.mxu0
        %v519 = vadd.f32 0.0, %v518
        %520 = vdwg.mxu0
        %521 = vmatpush.msra.mxu0 0.0
        %522 = vmatpush.msra.mxu0 0.0
        %523 = vmatpush.msra.mxu0 0.0
        %524 = vmatpush.msra.mxu0 0.0
        %525 = vmatpush.msra.mxu0 0.0
        %526 = vmatpush.msra.mxu0 0.0
        %527 = vmatpush.msra.mxu0 0.0
        %528 = vmatpush.msra.mxu0 0.0
        %529 = vmatpush.msra.mxu0 0.0
        %530 = vmatpush.msra.mxu0 0.0
        %531 = vmatpush.msra.mxu0 0.0
        %532 = vmatpush.msra.mxu0 0.0
        %533 = vmatpush.msra.mxu0 0.0
        %534 = vmatpush.msra.mxu0 0.0
        %535 = vmatpush.msra.mxu0 %v231
        %536 = vmatpush.msra.mxu0 %v227
        %537 = vmatmul.f32.gmra.mxu0 %v499
        %v538 = vpop.f32.mrf.mxu0
        %v539 = vadd.f32 0.0, %v538
        %540 = vdwg.mxu0
        %541 = vmatpush.msra.mxu0 0.0
        %542 = vmatpush.msra.mxu0 0.0
        %543 = vmatpush.msra.mxu0 0.0
        %544 = vmatpush.msra.mxu0 0.0
        %545 = vmatpush.msra.mxu0 0.0
        %546 = vmatpush.msra.mxu0 0.0
        %547 = vmatpush.msra.mxu0 0.0
        %548 = vmatpush.msra.mxu0 0.0
        %549 = vmatpush.msra.mxu0 0.0
        %550 = vmatpush.msra.mxu0 0.0
        %551 = vmatpush.msra.mxu0 0.0
        %552 = vmatpush.msra.mxu0 0.0
        %553 = vmatpush.msra.mxu0 0.0
        %554 = vmatpush.msra.mxu0 0.0
        %555 = vmatpush.msra.mxu0 %v232
        %556 = vmatpush.msra.mxu0 %v228
        %557 = vmatmul.f32.gmra.mxu0 %v499
        %v558 = vpop.f32.mrf.mxu0
        %v559 = vadd.f32 0.0, %v558
        %560 = vdwg.mxu0
        %561 = vmatpush.msra.mxu0 0.0
        %562 = vmatpush.msra.mxu0 0.0
        %563 = vmatpush.msra.mxu0 0.0
        %564 = vmatpush.msra.mxu0 0.0
        %565 = vmatpush.msra.mxu0 0.0
        %566 = vmatpush.msra.mxu0 0.0
        %567 = vmatpush.msra.mxu0 0.0
        %568 = vmatpush.msra.mxu0 0.0
        %569 = vmatpush.msra.mxu0 0.0
        %570 = vmatpush.msra.mxu0 0.0
        %571 = vmatpush.msra.mxu0 0.0
        %572 = vmatpush.msra.mxu0 0.0
        %573 = vmatpush.msra.mxu0 0.0
        %574 = vmatpush.msra.mxu0 0.0
        %575 = vmatpush.msra.mxu0 %v233
        %576 = vmatpush.msra.mxu0 %v229
        %577 = vmatmul.f32.gmra.mxu0 %v499
        %v578 = vpop.f32.mrf.mxu0
        %v579 = vadd.f32 0.0, %v578
        %580 = vdwg.mxu0
        %v581 = vmin.f32 %v494, %v519
        %v582 = vmin.f32 %v495, %v539
        %v583 = vmin.f32 %v496, %v559
        %v584 = vmin.f32 %v497, %v579
        %v586 = vsel %vm240, %v238, 0
        %588 = vmatpush.msra.mxu0 0.0
        %589 = vmatpush.msra.mxu0 0.0
        %590 = vmatpush.msra.mxu0 0.0
        %591 = vmatpush.msra.mxu0 0.0
        %592 = vmatpush.msra.mxu0 0.0
        %593 = vmatpush.msra.mxu0 0.0
        %594 = vmatpush.msra.mxu0 0.0
        %595 = vmatpush.msra.mxu0 0.0
        %596 = vmatpush.msra.mxu0 0.0
        %597 = vmatpush.msra.mxu0 0.0
        %598 = vmatpush.msra.mxu0 0.0
        %599 = vmatpush.msra.mxu0 0.0
        %600 = vmatpush.msra.mxu0 0.0
        %601 = vmatpush.msra.mxu0 0.0
        %602 = vmatpush.msra.mxu0 %v230
        %603 = vmatpush.msra.mxu0 %v226
        %604 = vmatmul.f32.gmra.mxu0 %v586
        %v605 = vpop.f32.mrf.mxu0
        %v606 = vadd.f32 0.0, %v605
        %607 = vdwg.mxu0
        %608 = vmatpush.msra.mxu0 0.0
        %609 = vmatpush.msra.mxu0 0.0
        %610 = vmatpush.msra.mxu0 0.0
        %611 = vmatpush.msra.mxu0 0.0
        %612 = vmatpush.msra.mxu0 0.0
        %613 = vmatpush.msra.mxu0 0.0
        %614 = vmatpush.msra.mxu0 0.0
        %615 = vmatpush.msra.mxu0 0.0
        %616 = vmatpush.msra.mxu0 0.0
        %617 = vmatpush.msra.mxu0 0.0
        %618 = vmatpush.msra.mxu0 0.0
        %619 = vmatpush.msra.mxu0 0.0
        %620 = vmatpush.msra.mxu0 0.0
        %621 = vmatpush.msra.mxu0 0.0
        %622 = vmatpush.msra.mxu0 %v231
        %623 = vmatpush.msra.mxu0 %v227
        %624 = vmatmul.f32.gmra.mxu0 %v586
        %v625 = vpop.f32.mrf.mxu0
        %v626 = vadd.f32 0.0, %v625
        %627 = vdwg.mxu0
        %628 = vmatpush.msra.mxu0 0.0
        %629 = vmatpush.msra.mxu0 0.0
        %630 = vmatpush.msra.mxu0 0.0
        %631 = vmatpush.msra.mxu0 0.0
        %632 = vmatpush.msra.mxu0 0.0
        %633 = vmatpush.msra.mxu0 0.0
        %634 = vmatpush.msra.mxu0 0.0
        %635 = vmatpush.msra.mxu0 0.0
        %636 = vmatpush.msra.mxu0 0.0
        %637 = vmatpush.msra.mxu0 0.0
        %638 = vmatpush.msra.mxu0 0.0
        %639 = vmatpush.msra.mxu0 0.0
        %640 = vmatpush.msra.mxu0 0.0
        %641 = vmatpush.msra.mxu0 0.0
        %642 = vmatpush.msra.mxu0 %v232
        %643 = vmatpush.msra.mxu0 %v228
        %644 = vmatmul.f32.gmra.mxu0 %v586
        %v645 = vpop.f32.mrf.mxu0
        %v646 = vadd.f32 0.0, %v645
        %647 = vdwg.mxu0
        %648 = vmatpush.msra.mxu0 0.0
        %649 = vmatpush.msra.mxu0 0.0
        %650 = vmatpush.msra.mxu0 0.0
        %651 = vmatpush.msra.mxu0 0.0
        %652 = vmatpush.msra.mxu0 0.0
        %653 = vmatpush.msra.mxu0 0.0
        %654 = vmatpush.msra.mxu0 0.0
        %655 = vmatpush.msra.mxu0 0.0
        %656 = vmatpush.msra.mxu0 0.0
        %657 = vmatpush.msra.mxu0 0.0
        %658 = vmatpush.msra.mxu0 0.0
        %659 = vmatpush.msra.mxu0 0.0
        %660 = vmatpush.msra.mxu0 0.0
        %661 = vmatpush.msra.mxu0 0.0
        %662 = vmatpush.msra.mxu0 %v233
        %663 = vmatpush.msra.mxu0 %v229
        %664 = vmatmul.f32.gmra.mxu0 %v586
        %v665 = vpop.f32.mrf.mxu0
        %v666 = vadd.f32 0.0, %v665
        %667 = vdwg.mxu0
        %v668 = vmin.f32 %v581, %v606
        %v669 = vmin.f32 %v582, %v626
        %v670 = vmin.f32 %v583, %v646
        %v671 = vmin.f32 %v584, %v666
        %v673 = vsel %vm240, %v239, 0
        %675 = vmatpush.msra.mxu0 0.0
        %676 = vmatpush.msra.mxu0 0.0
        %677 = vmatpush.msra.mxu0 0.0
        %678 = vmatpush.msra.mxu0 0.0
        %679 = vmatpush.msra.mxu0 0.0
        %680 = vmatpush.msra.mxu0 0.0
        %681 = vmatpush.msra.mxu0 0.0
        %682 = vmatpush.msra.mxu0 0.0
        %683 = vmatpush.msra.mxu0 0.0
        %684 = vmatpush.msra.mxu0 0.0
        %685 = vmatpush.msra.mxu0 0.0
        %686 = vmatpush.msra.mxu0 0.0
        %687 = vmatpush.msra.mxu0 0.0
        %688 = vmatpush.msra.mxu0 0.0
        %689 = vmatpush.msra.mxu0 %v230
        %690 = vmatpush.msra.mxu0 %v226
        %691 = vmatmul.f32.gmra.mxu0 %v673
        %v692 = vpop.f32.mrf.mxu0
        %v693 = vadd.f32 0.0, %v692
        %694 = vdwg.mxu0
        %695 = vmatpush.msra.mxu0 0.0
        %696 = vmatpush.msra.mxu0 0.0
        %697 = vmatpush.msra.mxu0 0.0
        %698 = vmatpush.msra.mxu0 0.0
        %699 = vmatpush.msra.mxu0 0.0
        %700 = vmatpush.msra.mxu0 0.0
        %701 = vmatpush.msra.mxu0 0.0
        %702 = vmatpush.msra.mxu0 0.0
        %703 = vmatpush.msra.mxu0 0.0
        %704 = vmatpush.msra.mxu0 0.0
        %705 = vmatpush.msra.mxu0 0.0
        %706 = vmatpush.msra.mxu0 0.0
        %707 = vmatpush.msra.mxu0 0.0
        %708 = vmatpush.msra.mxu0 0.0
        %709 = vmatpush.msra.mxu0 %v231
        %710 = vmatpush.msra.mxu0 %v227
        %711 = vmatmul.f32.gmra.mxu0 %v673
        %v712 = vpop.f32.mrf.mxu0
        %v713 = vadd.f32 0.0, %v712
        %714 = vdwg.mxu0
        %715 = vmatpush.msra.mxu0 0.0
        %716 = vmatpush.msra.mxu0 0.0
        %717 = vmatpush.msra.mxu0 0.0
        %718 = vmatpush.msra.mxu0 0.0
        %719 = vmatpush.msra.mxu0 0.0
        %720 = vmatpush.msra.mxu0 0.0
        %721 = vmatpush.msra.mxu0 0.0
        %722 = vmatpush.msra.mxu0 0.0
        %723 = vmatpush.msra.mxu0 0.0
        %724 = vmatpush.msra.mxu0 0.0
        %725 = vmatpush.msra.mxu0 0.0
        %726 = vmatpush.msra.mxu0 0.0
        %727 = vmatpush.msra.mxu0 0.0
        %728 = vmatpush.msra.mxu0 0.0
        %729 = vmatpush.msra.mxu0 %v232
        %730 = vmatpush.msra.mxu0 %v228
        %731 = vmatmul.f32.gmra.mxu0 %v673
        %v732 = vpop.f32.mrf.mxu0
        %v733 = vadd.f32 0.0, %v732
        %734 = vdwg.mxu0
        %735 = vmatpush.msra.mxu0 0.0
        %736 = vmatpush.msra.mxu0 0.0
        %737 = vmatpush.msra.mxu0 0.0
        %738 = vmatpush.msra.mxu0 0.0
        %739 = vmatpush.msra.mxu0 0.0
        %740 = vmatpush.msra.mxu0 0.0
        %741 = vmatpush.msra.mxu0 0.0
        %742 = vmatpush.msra.mxu0 0.0
        %743 = vmatpush.msra.mxu0 0.0
        %744 = vmatpush.msra.mxu0 0.0
        %745 = vmatpush.msra.mxu0 0.0
        %746 = vmatpush.msra.mxu0 0.0
        %747 = vmatpush.msra.mxu0 0.0
        %748 = vmatpush.msra.mxu0 0.0
        %749 = vmatpush.msra.mxu0 %v233
        %750 = vmatpush.msra.mxu0 %v229
        %751 = vmatmul.f32.gmra.mxu0 %v673
        %v752 = vpop.f32.mrf.mxu0
        %v753 = vadd.f32 0.0, %v752
        %754 = vdwg.mxu0
        %v755 = vmin.f32 %v668, %v693
        %v756 = vmin.f32 %v669, %v713
        %v757 = vmin.f32 %v670, %v733
        %v758 = vmin.f32 %v671, %v753
        %v759 = vmul.f32 %v226, %v226
        %v760 = vmul.f32 %v227, %v227
        %v761 = vmul.f32 %v228, %v228
        %v762 = vmul.f32 %v229, %v229
        %v763 = vmul.f32 %v230, %v230
        %v764 = vmul.f32 %v231, %v231
        %v765 = vmul.f32 %v232, %v232
        %v766 = vmul.f32 %v233, %v233
        %v767 = vadd.f32 %v759, %v763
        %v768 = vrot.slane %v767, 4
        %v769 = vadd.f32 %v767, %v768
        %v770 = vrot.slane %v769, 2
        %v771 = vadd.f32 %v769, %v770
        %v772 = vrot.slane %v771, 1
        %v773 = vadd.f32 %v771, %v772
        %v774 = vadd.f32 %v760, %v764
        %v775 = vrot.slane %v774, 4
        %v776 = vadd.f32 %v774, %v775
        %v777 = vrot.slane %v776, 2
        %v778 = vadd.f32 %v776, %v777
        %v779 = vrot.slane %v778, 1
        %v780 = vadd.f32 %v778, %v779
        %v781 = vadd.f32 %v761, %v765
        %v782 = vrot.slane %v781, 4
        %v783 = vadd.f32 %v781, %v782
        %v784 = vrot.slane %v783, 2
        %v785 = vadd.f32 %v783, %v784
        %v786 = vrot.slane %v785, 1
        %v787 = vadd.f32 %v785, %v786
        %v788 = vadd.f32 %v762, %v766
        %v789 = vrot.slane %v788, 4
        %v790 = vadd.f32 %v788, %v789
        %v791 = vrot.slane %v790, 2
        %v792 = vadd.f32 %v790, %v791
        %v793 = vrot.slane %v792, 1
        %v794 = vadd.f32 %v792, %v793
        %v795 = vsub.f32 %v773, 1.0
        %v796 = vsub.f32 %v780, 1.0
        %v797 = vsub.f32 %v787, 1.0
        %v798 = vsub.f32 %v794, 1.0
        %v799 = vadd.f32 %v755, %v795
        %v800 = vadd.f32 %v756, %v796
        %v801 = vadd.f32 %v757, %v797
        %v802 = vadd.f32 %v758, %v798
        %v807 = vrot.slane %v800, 4
        %v808 = vrot.slane %v802, 4
        %vm809 = vcmask 1043456
        %v810 = vsel %vm809, %v799, %v807
        %v811 = vsel %vm809, %v801, %v808
        %814 = vst [vmem:[%s223] sm:$0xff] %v810
        %815 = vst [vmem:[%s223 + $0x8] sm:$0xff] %v811
        %s816 = sand.u32 %s98, 1
        %s817 = scalar_lea.sflag [#allocation4], %s816
        %s818 = sand.u32 %s98, 1
        %s819 = smul.addr %s818, 16
        %s820 = scalar_lea.vmem [#allocation7], %s819
        // Predicated region
        $region37: #{tpu_custom_call.1} parent=27 // pred_check
          %p821 = pneg %p108
        $region38: #{tpu_custom_call.1} parent=27 // pred_check_branch
          %823 = sbr.rel (%p821) target = $region40
        $region39: #{tpu_custom_call.1} parent=27 // pred_region
          %s824 = smul.u32 4, %s27
          %826 = vsyncadd %s817, 0
          %s827 = smul.addr %s26, 8
          %s828 = sadd.s32 %s824, %s827
          %s829 = smul.addr %s828, 4
          %s830 = scalar_lea.hbm %s2, %s829
          %s832 = sshll.u32 %s820, 4
          %s833 = int_to_ptr.vmem [resolvable:$true] %s832
          %s834 = sshll.u32 %s830, 4
          %s835 = int_to_ptr.hbm [resolvable:$true] %s834
          %837 = dma.vmem_to_hbm [thread:$0]  %s833, 256, %s835, %s817
        $region40: #{tpu_custom_call.1} parent=27 // pred_fallthru
          _
      $region28: #{tpu_custom_call.1} parent=5 // pred_fallthru
        _
      %p838 = scmp.le.s32.totalorder 2, %s17
      // Predicated region
      $region41: #{tpu_custom_call.1} parent=5 // pred_check
        %p839 = pneg %p838
      $region42: #{tpu_custom_call.1} parent=5 // pred_check_branch
        %841 = sbr.rel (%p839) target = $region44
      $region43: #{tpu_custom_call.1} parent=5 // pred_region
        %s842 = ssub.s32 %s17, 2
        // Predicated region
        $region45: #{tpu_custom_call.1} parent=43 // pred_check
          %p843 = pneg %p114
        $region46: #{tpu_custom_call.1} parent=43 // pred_check_branch
          %845 = sbr.rel (%p843) target = $region48
        $region47: #{tpu_custom_call.1} parent=43 // pred_region
          %s846 = sand.u32 %s99, 1
          %s847 = scalar_lea.sflag [#allocation4], %s846
          %s848 = sand.u32 %s99, 1
          %s849 = smul.addr %s848, 16
          %s850 = scalar_lea.vmem [#allocation7], %s849
          %852 = dma.done %s847, 256
        $region48: #{tpu_custom_call.1} parent=43 // pred_fallthru
          _
      $region44: #{tpu_custom_call.1} parent=5 // pred_fallthru
        _
    $region6: #{tpu_custom_call.1} parent=1 // loop_footer
      %s21 = sadd.s32 1, %s17
    $region7: #{tpu_custom_call.1} parent=1 // loop_footer_branch
      %16 = sbr.rel target = $region3
    $region8: #{tpu_custom_call.1} parent=1 // loop_exit
      _
    %853 = vsyncpa [#allocation3], 1
    %s854 = scalar_lea.sflag [#allocation3], 1
    %855 = vsyncpa %s854, 1
    %856 = vsyncpa [#allocation6], 1
    %s857 = scalar_lea.sflag [#allocation6], 1
    %858 = vsyncpa %s857, 1
    %859 = vsyncpa [#allocation4], 1
    %s860 = scalar_lea.sflag [#allocation4], 1
    %861 = vsyncpa %s860, 1

</llo_original>
